<compile_context>
chip_gen: v5e
topology: v5e:2x2
jax: 0.10.0
libtpu: 0.0.40
codegen_flags: <defaults>
</compile_context>

<pallas_src>
import jax
import jax.numpy as jnp
from jax.experimental import pallas as pl
from jax.experimental.pallas import tpu as pltpu


def _exp_half_kernel(x_ref, o_ref):
    # elementwise hot path: exp (EUP) + scale (VPU), one lane-dense block
    o_ref[...] = (jnp.exp(x_ref[...]) * 0.5).astype(o_ref.dtype)


def _sublane_multiple(dtype) -> int:
    # f32 -> 8, bf16 -> 16, int8/fp8 -> 32 (sub-32-bit dtypes pack sublanes)
    itemsize = jnp.dtype(dtype).itemsize
    return max(8, 32 // itemsize)


def _vmem_capacity_bytes() -> int:
    # Trace-time hardware query; fall back to the most conservative figure
    # (v7x: 64 MiB per TensorCore) if the query is unavailable.
    try:
        cap = int(pltpu.get_tpu_info().vmem_capacity_bytes)
        if cap > 0:
            return cap
    except Exception:
        pass
    return 64 * 1024 * 1024


def _pick_lane_width(n: int) -> int:
    """Largest C = 128*d (d divides n//128, C <= 8192). Requires n % 128 == 0."""
    m = n // 128
    max_d = min(m, 8192 // 128)
    for d in range(max_d, 0, -1):
        if m % d == 0:
            return 128 * d
    return 128


def _run_slab(flat: jax.Array, target_block_bytes: int, vmem_cap: int) -> jax.Array:
    """Run the kernel on a flat array whose size is divisible by 128 (zero-copy)."""
    n = flat.size
    dtype = flat.dtype
    itemsize = jnp.dtype(dtype).itemsize
    sub = _sublane_multiple(dtype)

    C = _pick_lane_width(n)
    rows = n // C
    x2 = flat.reshape(rows, C)

    # Rows per block by byte budget; keep a sublane multiple (or full extent
    # for short slabs, which satisfies the tiling rule as-is).
    row_bytes = C * itemsize
    tr = max(1, target_block_bytes // row_bytes)
    if rows <= sub:
        tr = rows
    else:
        tr = max(sub, (min(tr, rows) // sub) * sub)

    block_bytes = tr * C * itemsize
    # Double-buffered in + out footprint ~= 4x block; add headroom, stay
    # comfortably under physical VMEM (v7x has only 64 MiB per TC).
    vmem_limit = min(4 * block_bytes + (4 << 20), max(16 << 20, vmem_cap - (8 << 20)))

    grid = (pl.cdiv(rows, tr),)  # ragged last row-block is masked by Pallas

    elems = rows * C
    out2 = pl.pallas_call(
        _exp_half_kernel,
        out_shape=jax.ShapeDtypeStruct((rows, C), dtype),
        grid_spec=pltpu.PrefetchScalarGridSpec(
            num_scalar_prefetch=0,
            grid=grid,
            in_specs=[pl.BlockSpec((tr, C), lambda i: (i, 0))],
            out_specs=pl.BlockSpec((tr, C), lambda i: (i, 0)),
        ),
        compiler_params=pltpu.CompilerParams(
            # TODO(synk): on v7x verify via xprof that this axis is split across
            # both TensorCores; if one TC idles, switch to pltpu.CORE_PARALLEL.
            dimension_semantics=("parallel",),
            vmem_limit_bytes=int(vmem_limit),
        ),
        cost_estimate=pl.CostEstimate(
            flops=elems,
            transcendentals=elems,
            bytes_accessed=2 * elems * itemsize,
        ),
    )(x2)
    return out2.reshape(-1)


def exp_half(
    x: jax.Array,
    *,
    target_block_bytes: int | None = None,
    min_pallas_elements: int = 1 << 20,
) -> jax.Array:
    """Compute exp(x) * 0.5 with a Pallas TPU kernel. Works for any shape."""
    orig_shape = x.shape
    dtype = x.dtype
    n = x.size

    # Tiny / empty inputs: the fused XLA elementwise op is already at the HBM
    # roofline and avoids custom-call dispatch + pipeline prologue overhead.
    if n == 0 or n < min_pallas_elements:
        return (jnp.exp(x) * 0.5).astype(dtype)

    # Generation-aware block sizing: bigger blocks amortize the ~0.35 us/step
    # overhead on 128 MiB-VMEM chips (v5e/v6e); cap on 64 MiB-VMEM v7x.
    vmem_cap = _vmem_capacity_bytes()
    if target_block_bytes is None:
        target_block_bytes = (8 << 20) if vmem_cap >= (100 << 20) else (4 << 20)

    flat = x.reshape(-1)

    if n % 128 == 0:
        # Common case: whole tensor streams through the kernel zero-copy.
        out_flat = _run_slab(flat, target_block_bytes, vmem_cap)
    else:
        # Ragged total size: run the 128-aligned bulk through the kernel
        # (zero-copy reshape) and handle only the <128-element tail with jnp.
        bulk_n = (n // 128) * 128
        if bulk_n == 0:
            return (jnp.exp(x) * 0.5).astype(dtype)
        bulk_out = _run_slab(flat[:bulk_n], target_block_bytes, vmem_cap)
        tail_out = (jnp.exp(flat[bulk_n:]) * 0.5).astype(dtype)
        out_flat = jnp.concatenate([bulk_out, tail_out])

    return out_flat.reshape(orig_shape)


if __name__ == "__main__":
    # Small NCHW-style input consistent with typical module usage.
    # min_pallas_elements=0 forces the Pallas path even at this small size so
    # the kernel itself is exercised and validated (default config would use
    # the fused-XLA early exit here).
    x = jax.random.normal(jax.random.PRNGKey(0), (2, 4, 16, 16), dtype=jnp.float32)
    y = jax.block_until_ready(exp_half(x, min_pallas_elements=0))
    y_ref = jnp.exp(x) * 0.5
    assert y.shape == x.shape and y.dtype == x.dtype
    assert jnp.allclose(y, y_ref, rtol=1e-6, atol=1e-6)

    # Ragged total size (201 elems): exercises the bulk-kernel + jnp-tail path.
    x2 = jax.random.normal(jax.random.PRNGKey(1), (3, 67), dtype=jnp.float32)
    y2 = jax.block_until_ready(exp_half(x2, min_pallas_elements=0))
    assert jnp.allclose(y2, jnp.exp(x2) * 0.5, rtol=1e-6, atol=1e-6)

    # Default config on a tiny input: early-exit (no pallas_call), same result.
    x3 = jax.random.normal(jax.random.PRNGKey(2), (3, 5, 7), dtype=jnp.float32)
    y3 = jax.block_until_ready(exp_half(x3))
    assert jnp.allclose(y3, jnp.exp(x3) * 0.5, rtol=1e-6, atol=1e-6)

    print("KERNEL_OK")
</pallas_src>

<mosaic_0001>
module attributes {stable_mosaic.version = 11 : i64} {
  func.func @_exp_half_kernel(%arg0: i32, %arg1: memref<1x2048xf32, #tpu.memory_space<vmem>>, %arg2: memref<1x2048xf32, #tpu.memory_space<vmem>>) attributes {dimension_semantics = [#tpu.dimension_semantics<parallel>], iteration_bounds = array<i64: 1>, scalar_prefetch = 0 : i64, scratch_operands = 0 : i64, tpu.core_type = #tpu.core_type<tc>, window_params = [{transform_indices = @transform_0, window_bounds = array<i64: 1, 2048>}, {transform_indices = @transform_1, window_bounds = array<i64: 1, 2048>}]} {
    %c0 = arith.constant 0 : index
    %c0_0 = arith.constant 0 : index
    %0 = vector.load %arg1[%c0, %c0_0] : memref<1x2048xf32, #tpu.memory_space<vmem>>, vector<1x2048xf32>
    %1 = math.exp %0 : vector<1x2048xf32>
    %cst = arith.constant 5.000000e-01 : f32
    %2 = vector.broadcast %cst : f32 to vector<1x2048xf32>
    %3 = arith.mulf %1, %2 : vector<1x2048xf32>
    %c0_1 = arith.constant 0 : index
    %c0_2 = arith.constant 0 : index
    %4 = vector.load %arg2[%c0_1, %c0_2] : memref<1x2048xf32, #tpu.memory_space<vmem>>, vector<1x2048xf32>
    tpu.vector_store %arg2[%c0_1, %c0_2], %3 {strides = array<i32>} : memref<1x2048xf32, #tpu.memory_space<vmem>>, vector<1x2048xf32>,
    return
  }
  func.func @transform_0(%arg0: i32) -> (i32, i32) {
    %c0_i32 = arith.constant 0 : i32
    %c0_i32_0 = arith.constant 0 : i32
    return %arg0, %c0_i32 : i32, i32
  }
  func.func @transform_1(%arg0: i32) -> (i32, i32) {
    %c0_i32 = arith.constant 0 : i32
    %c0_i32_0 = arith.constant 0 : i32
    return %arg0, %c0_i32 : i32, i32
  }
}

</mosaic_0001>

<llo_original>
// kernel: tpu_custom_call.1
$region0: #{tpu_custom_call.1}
  #allocation0 [shape = 'u32[]', space=smem, size = 0x4, offset = 0x4, fixed_abs, tag = 'smem constant byte address 0x4 - core index']
  #allocation1 [shape = 'u32[72,128]{1,0:T(1,128)}', space=vmem, size = 0x9000, scoped, tag = 'internal scratch']
  %s0 = inlined_call_operand.hbm [shape: f32[1,2048], index: 0, kind: input, shape index: {}]
  %s1 = inlined_call_operand.hbm [shape: f32[1,2048], index: 1, kind: output, shape index: {}]
  %s2 = sld [smem:[#allocation0]]
  $region18: #{tpu_custom_call.1} parent=0
    _
  %s4 = ssub.s32 1, %s2
  %s5 = scalar_select 0, %s4, %s2
  $region1: #{tpu_custom_call.1} parent=0
    #allocation2 [shape = 'u8[8192]{0}', space=vmem, size = 0x2000, scoped, tag = 'input window, operand 0, single buffered']
    #allocation3 [shape = 's32[1]{0}', space=sflag, size = 0x4, scoped, tag = 'scoped memory for tpu_custom_call.1']
    #allocation4 [shape = 's32[1]{0}', space=sflag, size = 0x4, scoped, tag = 'scoped memory for tpu_custom_call.1']
    #allocation5 [shape = 'u8[8192]{0}', space=vmem, size = 0x2000, scoped, tag = 'output window, operand 0, single buffered']
    %6 = vsyncpa [#allocation3], 0
    %7 = vsyncpa [#allocation4], 0
    // Predicated region
    $region2: #{tpu_custom_call.1} parent=1 // pred_check
      _
    $region3: #{tpu_custom_call.1} parent=1 // pred_check_branch
      %9 = sbr.rel (0) target = $region5
    $region4: #{tpu_custom_call.1} parent=1 // pred_region
      %11 = vsyncadd [#allocation3], 0
      %s13 = sshll.u32 %s0, 4
      %s14 = int_to_ptr.hbm [resolvable:$true] %s13
      %s15 = sshll.u32 [#allocation2], 4
      %s16 = int_to_ptr.vmem [resolvable:$true] %s15
      %18 = dma.hbm_to_vmem [thread:$0]  %s14, 256, %s16, [#allocation3]
    $region5: #{tpu_custom_call.1} parent=1 // pred_fallthru
      _
    // Predicated region
    $region6: #{tpu_custom_call.1} parent=1 // pred_check
      _
    $region7: #{tpu_custom_call.1} parent=1 // pred_check_branch
      %20 = sbr.rel (0) target = $region9
    $region8: #{tpu_custom_call.1} parent=1 // pred_region
      %22 = dma.done [#allocation3], 256
    $region9: #{tpu_custom_call.1} parent=1 // pred_fallthru
      _
    %v23 = vld [vmem:[#allocation2] sm:$0xff]
    %v24 = vld [vmem:[#allocation2 + $0x8] sm:$0xff]
    %v25 = vmul.f32 %v23, 1.442695
    %v26 = vpow.pop %v25
    %v27 = vmul.f32 %v24, 1.442695
    %v28 = vpow.pop %v27
    %v29 = vmul.f32 %v26, 0.5
    %v30 = vmul.f32 %v28, 0.5
    %31 = vst [vmem:[#allocation5] sm:$0xff] %v29
    %32 = vst [vmem:[#allocation5 + $0x8] sm:$0xff] %v30
    // Predicated region
    $region10: #{tpu_custom_call.1} parent=1 // pred_check
      _
    $region11: #{tpu_custom_call.1} parent=1 // pred_check_branch
      %34 = sbr.rel (0) target = $region13
    $region12: #{tpu_custom_call.1} parent=1 // pred_region
      %36 = vsyncadd [#allocation4], 0
      %s38 = sshll.u32 [#allocation5], 4
      %s39 = int_to_ptr.vmem [resolvable:$true] %s38
      %s40 = sshll.u32 %s1, 4
      %s41 = int_to_ptr.hbm [resolvable:$true] %s40
      %43 = dma.vmem_to_hbm [thread:$0]  %s39, 256, %s41, [#allocation4]
    $region13: #{tpu_custom_call.1} parent=1 // pred_fallthru
      _
    // Predicated region
    $region14: #{tpu_custom_call.1} parent=1 // pred_check
      _
    $region15: #{tpu_custom_call.1} parent=1 // pred_check_branch
      %45 = sbr.rel (0) target = $region17
    $region16: #{tpu_custom_call.1} parent=1 // pred_region
      %47 = dma.done [#allocation4], 256
    $region17: #{tpu_custom_call.1} parent=1 // pred_fallthru
      _
    %48 = vsyncpa [#allocation3], 1
    %49 = vsyncpa [#allocation4], 1

</llo_original>
